<compile_context>
chip_gen: v5e
topology: v5e:2x2
jax: 0.10.0
libtpu: 0.0.40
codegen_flags: <defaults>
</compile_context>

<pallas_src>
import functools
import math

import numpy as np
import jax
import jax.numpy as jnp
from jax.experimental import pallas as pl
from jax.experimental.pallas import tpu as pltpu


# ----------------------------- Pallas kernel ------------------------------


def _stack_taps(x2d, mask_rows, H, W):
    """Build the (9*Cin, H*W) im2col-style operand of a 3x3 'same' conv.

    x2d       : (Cin, H*W) f32 value, lane-dense (last dim = flattened H*W)
    mask_rows : list of 9 (1, H*W) f32 values; mask_rows[t] zeroes positions whose
                tap falls outside the image (reproduces zero padding at the border
                and kills the roll wrap-around).
    Row t*Cin + c of the result is channel c shifted for tap t = kh*3 + kw.
    """
    hw = x2d.shape[1]
    parts = []
    for kh in range(3):
        for kw in range(3):
            dh, dw = kh - 1, kw - 1
            t = kh * 3 + kw
            if dh == 0 and dw == 0:
                parts.append(x2d)                         # center tap: no shift, no mask
            else:
                # shifted[:, p] = x2d[:, p + dh*W + dw]
                rolled = pltpu.roll(x2d, shift=(-(dh * W + dw)) % hw, axis=1)
                parts.append(rolled * mask_rows[t])
    return jnp.concatenate(parts, axis=0)                 # (9*Cin, H*W)


def _uafm_kernel(x_ref, y_ref, m_ref, wx_ref, bx_ref, wo_ref, bo_ref, ut_ref,
                 o_ref, *, H, W):
    """Fused UAFM forward for one batch element.

    x_ref : (1, Cxp, H*W)   low-level feature (channels zero-padded to Cxp)
    y_ref : (1, Cy, Hi*Wi)  high-level feature
    m_ref : (9, H*W)        per-tap 0/1 border masks (f32)
    wx_ref: (Cy, 9*Cxp)     conv_x weights, tap-major / channel-minor, BN scale folded
    bx_ref: (Cy, 1)         conv_x folded BN bias
    wo_ref: (Cout, 9*Cy)    conv_out weights, same layout, BN scale folded
    bo_ref: (Cout, 1)       conv_out folded BN bias
    ut_ref: (Hi*Wi, H*W)    kron(Wh, Ww)^T bilinear interpolation matrix
    o_ref : (1, Cout, H*W)
    """
    masks = m_ref[...]                                     # load once
    mask_rows = [masks[t:t + 1, :] for t in range(9)]      # sliced once, reused twice

    # prepare_x: conv3x3 (single MXU matmul) + folded BN bias + ReLU
    xs = _stack_taps(x_ref[0], mask_rows, H, W)            # (9*Cxp, H*W)
    x1 = jnp.maximum(
        jnp.dot(wx_ref[...], xs, preferred_element_type=jnp.float32) + bx_ref[...],
        0.0)                                               # (Cy, H*W)

    # prepare_y: bilinear upsample as a single matmul; fuse: add
    y_up = jnp.dot(y_ref[0], ut_ref[...],
                   preferred_element_type=jnp.float32)     # (Cy, H*W)
    s = x1 + y_up

    # fuse: conv3x3 (single MXU matmul) + folded BN bias + ReLU
    ss = _stack_taps(s, mask_rows, H, W)                   # (9*Cy, H*W)
    out = jnp.maximum(
        jnp.dot(wo_ref[...], ss, preferred_element_type=jnp.float32) + bo_ref[...],
        0.0)                                               # (Cout, H*W)
    o_ref[0] = out.astype(o_ref.dtype)


# ------------------------------ JAX wrapper --------------------------------


def _bilinear_matrix(out_size, in_size):
    """Interpolation matrix matching torch F.interpolate(mode='bilinear', align_corners=False)."""
    m = np.zeros((out_size, in_size), np.float32)
    if in_size == 1:
        m[:, 0] = 1.0
        return m
    scale = in_size / out_size
    for p in range(out_size):
        src = (p + 0.5) * scale - 0.5
        src = max(src, 0.0)
        i0 = min(int(np.floor(src)), in_size - 1)
        i1 = min(i0 + 1, in_size - 1)
        lam = src - i0
        m[p, i0] += 1.0 - lam
        m[p, i1] += lam
    return m


def _tap_masks(H, W):
    """(9, H*W) 0/1 masks: mask[t, p] == 1 iff tap t of position p lies inside the image."""
    hw = H * W
    p = np.arange(hw)
    hh = p // W
    ww = p % W
    m = np.zeros((9, hw), np.float32)
    for kh in range(3):
        for kw in range(3):
            dh, dw = kh - 1, kw - 1
            valid = ((hh + dh >= 0) & (hh + dh < H) &
                     (ww + dw >= 0) & (ww + dw < W))
            m[kh * 3 + kw] = valid.astype(np.float32)
    return m


def build_geometry(h, w, hy, wy):
    """Device-resident, shape-only constants built once (not per call)."""
    wh = _bilinear_matrix(h, hy)
    ww_ = _bilinear_matrix(w, wy)
    return dict(
        u_t=jnp.asarray(np.kron(wh, ww_).T),    # (Hy*Wy, H*W), lane-dense result layout
        masks=jnp.asarray(_tap_masks(h, w)),    # (9, H*W)
    )


@jax.jit
def uafm_forward(params, geom, x, y):
    """UAFM.forward.  x: (N, x_ch, Hx, Wx), y: (N, y_ch, Hy, Wy), NCHW float32."""
    # check()
    assert x.ndim == 4 and y.ndim == 4
    assert x.shape[2] >= y.shape[2] and x.shape[3] >= y.shape[3]

    n, cx, h, w = x.shape
    _, cy, hy, wy = y.shape
    px, po = params['conv_x'], params['conv_out']
    cout = po['wflat'].shape[0]
    cxp = px['wflat'].shape[1] // 9            # zero-padded input channel count
    hw, hiwi = h * w, hy * wy

    # Lane-dense spatial flattening; pad x's channels to a full sublane group.
    x_flat = x.reshape(n, cx, hw)
    if cxp > cx:
        x_flat = jnp.pad(x_flat, ((0, 0), (0, cxp - cx), (0, 0)))
    y_flat = y.reshape(n, cy, hiwi)

    flops = n * 2 * hw * (cy * 9 * cxp + cy * hiwi + cout * 9 * cy)
    bytes_accessed = 4 * (n * cxp * hw + n * cy * hiwi + 9 * hw
                          + cy * 9 * cxp + cy + cout * 9 * cy + cout
                          + hiwi * hw + n * cout * hw)

    out_flat = pl.pallas_call(
        functools.partial(_uafm_kernel, H=h, W=w),
        out_shape=jax.ShapeDtypeStruct((n, cout, hw), jnp.float32),
        grid=(n,),
        in_specs=[
            pl.BlockSpec((1, cxp, hw), lambda i: (i, 0, 0)),
            pl.BlockSpec((1, cy, hiwi), lambda i: (i, 0, 0)),
            pl.BlockSpec((9, hw), lambda i: (0, 0)),
            pl.BlockSpec((cy, 9 * cxp), lambda i: (0, 0)),
            pl.BlockSpec((cy, 1), lambda i: (0, 0)),
            pl.BlockSpec((cout, 9 * cy), lambda i: (0, 0)),
            pl.BlockSpec((cout, 1), lambda i: (0, 0)),
            pl.BlockSpec((hiwi, hw), lambda i: (0, 0)),
        ],
        out_specs=pl.BlockSpec((1, cout, hw), lambda i: (i, 0, 0)),
        compiler_params=pltpu.CompilerParams(
            dimension_semantics=("parallel",)),
        cost_estimate=pl.CostEstimate(
            flops=flops, transcendentals=0, bytes_accessed=bytes_accessed),
    )(x_flat, y_flat, geom['masks'], px['wflat'], px['b'], po['wflat'], po['b'],
      geom['u_t'])

    return out_flat.reshape(n, cout, h, w)


# ------------------------- deterministic parameters ------------------------


def init_conv_bn_relu(key, cin, cout, k=3):
    kw_, kb, kg, kbt, km, kv = jax.random.split(key, 6)
    fan_in = cin * k * k
    bound = 1.0 / math.sqrt(fan_in)
    w = jax.random.uniform(kw_, (cout, cin, k, k), jnp.float32, -bound, bound)
    conv_b = jax.random.uniform(kb, (cout,), jnp.float32, -bound, bound)
    gamma = jax.random.uniform(kg, (cout,), jnp.float32, 0.5, 1.5)
    beta = jax.random.uniform(kbt, (cout,), jnp.float32, -0.5, 0.5)
    mean = jax.random.uniform(km, (cout,), jnp.float32, -0.5, 0.5)
    var = jax.random.uniform(kv, (cout,), jnp.float32, 0.5, 1.5)
    eps = 1e-5
    scale = gamma / jnp.sqrt(var + eps)
    bias = (conv_b - mean) * scale + beta

    # Kernel form: BN scale folded into the weights, input channels zero-padded to a
    # multiple of 8 (full sublane group), flattened tap-major / channel-minor so it
    # matches the (9*Cin, H*W) stacked-tap operand: wflat[o, t*cinp + c].
    cinp = ((cin + 7) // 8) * 8
    w_scaled = w * scale[:, None, None, None]                   # (Cout, Cin, 3, 3)
    w_pad = jnp.pad(w_scaled, ((0, 0), (0, cinp - cin), (0, 0), (0, 0)))
    wflat = jnp.transpose(w_pad, (0, 2, 3, 1)).reshape(cout, k * k * cinp)
    return dict(
        wflat=wflat,                 # kernel: (Cout, 9*Cinp), BN scale folded
        b=bias.reshape(cout, 1),     # kernel + reference: folded BN bias
        w_oihw=w,                    # reference: raw conv weight (OIHW)
        scale=scale,                 # reference: BN scale
    )


# ------------------------------ pure-JAX ref -------------------------------


def _cbr_ref(x, p):
    out = jax.lax.conv_general_dilated(
        x, p['w_oihw'], window_strides=(1, 1), padding='SAME',
        dimension_numbers=('NCHW', 'OIHW', 'NCHW'),
        precision=jax.lax.Precision.HIGHEST)
    scale = p['scale'].reshape(1, -1, 1, 1)
    bias = p['b'].reshape(1, -1, 1, 1)
    return jnp.maximum(out * scale + bias, 0.0)


def reference_forward(params, x, y):
    x1 = _cbr_ref(x, params['conv_x'])
    wh = jnp.asarray(_bilinear_matrix(x.shape[2], y.shape[2]))
    ww = jnp.asarray(_bilinear_matrix(x.shape[3], y.shape[3]))
    y_up = jnp.einsum('ph,nchw,qw->ncpq', wh, y, ww,
                      precision=jax.lax.Precision.HIGHEST)
    return _cbr_ref(x1 + y_up, params['conv_out'])


# ---------------------------------- main -----------------------------------


if __name__ == "__main__":
    key = jax.random.PRNGKey(0)
    kx, ky, kp1, kp2 = jax.random.split(key, 4)

    N, x_ch, y_ch, out_ch = 2, 4, 8, 8
    Hx = Wx = 16         # low-level feature spatial size
    Hy = Wy = 8          # high-level feature spatial size (<= x's)

    x = jax.random.normal(kx, (N, x_ch, Hx, Wx), jnp.float32)
    y = jax.random.normal(ky, (N, y_ch, Hy, Wy), jnp.float32)

    params = {
        'conv_x': init_conv_bn_relu(kp1, x_ch, y_ch, 3),
        'conv_out': init_conv_bn_relu(kp2, y_ch, out_ch, 3),
    }
    geom = build_geometry(Hx, Wx, Hy, Wy)   # built once, device-resident

    out = uafm_forward(params, geom, x, y)
    out = jax.block_until_ready(out)

    ref = reference_forward(params, x, y)
    np.testing.assert_allclose(np.asarray(out), np.asarray(ref),
                               rtol=5e-3, atol=5e-3)

    print("KERNEL_OK")
</pallas_src>

<mosaic_0001>
module attributes {stable_mosaic.version = 11 : i64} {
  func.func @_uafm_kernel(%arg0: i32, %arg1: memref<1x8x256xf32, #tpu.memory_space<vmem>>, %arg2: memref<1x8x64xf32, #tpu.memory_space<vmem>>, %arg3: memref<9x256xf32, #tpu.memory_space<vmem>>, %arg4: memref<8x72xf32, #tpu.memory_space<vmem>>, %arg5: memref<8x1xf32, #tpu.memory_space<vmem>>, %arg6: memref<8x72xf32, #tpu.memory_space<vmem>>, %arg7: memref<8x1xf32, #tpu.memory_space<vmem>>, %arg8: memref<64x256xf32, #tpu.memory_space<vmem>>, %arg9: memref<1x8x256xf32, #tpu.memory_space<vmem>>) attributes {dimension_semantics = [#tpu.dimension_semantics<parallel>], iteration_bounds = array<i64: 2>, scalar_prefetch = 0 : i64, scratch_operands = 0 : i64, tpu.core_type = #tpu.core_type<tc>, window_params = [{transform_indices = @transform_0, window_bounds = array<i64: 1, 8, 256>}, {transform_indices = @transform_1, window_bounds = array<i64: 1, 8, 64>}, {pipeline_mode = #tpu.pipeline_mode<synchronous>, transform_indices = @transform_2, window_bounds = array<i64: 9, 256>}, {pipeline_mode = #tpu.pipeline_mode<synchronous>, transform_indices = @transform_3, window_bounds = array<i64: 8, 72>}, {pipeline_mode = #tpu.pipeline_mode<synchronous>, transform_indices = @transform_4, window_bounds = array<i64: 8, 1>}, {pipeline_mode = #tpu.pipeline_mode<synchronous>, transform_indices = @transform_5, window_bounds = array<i64: 8, 72>}, {pipeline_mode = #tpu.pipeline_mode<synchronous>, transform_indices = @transform_6, window_bounds = array<i64: 8, 1>}, {pipeline_mode = #tpu.pipeline_mode<synchronous>, transform_indices = @transform_7, window_bounds = array<i64: 64, 256>}, {transform_indices = @transform_8, window_bounds = array<i64: 1, 8, 256>}]} {
    %c0 = arith.constant 0 : index
    %c0_0 = arith.constant 0 : index
    %0 = vector.load %arg3[%c0, %c0_0] : memref<9x256xf32, #tpu.memory_space<vmem>>, vector<9x256xf32>
    %1 = vector.extract_strided_slice %0 {offsets = [0, 0], sizes = [1, 256], strides = [1, 1]} : vector<9x256xf32> to vector<1x256xf32>
    %2 = vector.extract_strided_slice %0 {offsets = [1, 0], sizes = [1, 256], strides = [1, 1]} : vector<9x256xf32> to vector<1x256xf32>
    %3 = vector.extract_strided_slice %0 {offsets = [2, 0], sizes = [1, 256], strides = [1, 1]} : vector<9x256xf32> to vector<1x256xf32>
    %4 = vector.extract_strided_slice %0 {offsets = [3, 0], sizes = [1, 256], strides = [1, 1]} : vector<9x256xf32> to vector<1x256xf32>
    %5 = vector.extract_strided_slice %0 {offsets = [5, 0], sizes = [1, 256], strides = [1, 1]} : vector<9x256xf32> to vector<1x256xf32>
    %6 = vector.extract_strided_slice %0 {offsets = [6, 0], sizes = [1, 256], strides = [1, 1]} : vector<9x256xf32> to vector<1x256xf32>
    %7 = vector.extract_strided_slice %0 {offsets = [7, 0], sizes = [1, 256], strides = [1, 1]} : vector<9x256xf32> to vector<1x256xf32>
    %8 = vector.extract_strided_slice %0 {offsets = [8, 0], sizes = [1, 256], strides = [1, 1]} : vector<9x256xf32> to vector<1x256xf32>
    %c0_1 = arith.constant 0 : index
    %c0_2 = arith.constant 0 : index
    %c0_3 = arith.constant 0 : index
    %9 = vector.load %arg1[%c0_1, %c0_2, %c0_3] : memref<1x8x256xf32, #tpu.memory_space<vmem>>, vector<1x8x256xf32>
    %10 = vector.shape_cast %9 : vector<1x8x256xf32> to vector<8x256xf32>
    %c17_i32 = arith.constant 17 : i32
    %11 = tpu.dynamic_rotate %10 by %c17_i32 dim 1 : vector<8x256xf32>, i32 -> vector<8x256xf32>
    %12 = vector.broadcast %1 : vector<1x256xf32> to vector<8x256xf32>
    %13 = arith.mulf %11, %12 : vector<8x256xf32>
    %c16_i32 = arith.constant 16 : i32
    %14 = tpu.dynamic_rotate %10 by %c16_i32 dim 1 : vector<8x256xf32>, i32 -> vector<8x256xf32>
    %15 = vector.broadcast %2 : vector<1x256xf32> to vector<8x256xf32>
    %16 = arith.mulf %14, %15 : vector<8x256xf32>
    %c15_i32 = arith.constant 15 : i32
    %17 = tpu.dynamic_rotate %10 by %c15_i32 dim 1 : vector<8x256xf32>, i32 -> vector<8x256xf32>
    %18 = vector.broadcast %3 : vector<1x256xf32> to vector<8x256xf32>
    %19 = arith.mulf %17, %18 : vector<8x256xf32>
    %c1_i32 = arith.constant 1 : i32
    %20 = tpu.dynamic_rotate %10 by %c1_i32 dim 1 : vector<8x256xf32>, i32 -> vector<8x256xf32>
    %21 = vector.broadcast %4 : vector<1x256xf32> to vector<8x256xf32>
    %22 = arith.mulf %20, %21 : vector<8x256xf32>
    %c255_i32 = arith.constant 255 : i32
    %23 = tpu.dynamic_rotate %10 by %c255_i32 dim 1 : vector<8x256xf32>, i32 -> vector<8x256xf32>
    %24 = vector.broadcast %5 : vector<1x256xf32> to vector<8x256xf32>
    %25 = arith.mulf %23, %24 : vector<8x256xf32>
    %c241_i32 = arith.constant 241 : i32
    %26 = tpu.dynamic_rotate %10 by %c241_i32 dim 1 : vector<8x256xf32>, i32 -> vector<8x256xf32>
    %27 = vector.broadcast %6 : vector<1x256xf32> to vector<8x256xf32>
    %28 = arith.mulf %26, %27 : vector<8x256xf32>
    %c240_i32 = arith.constant 240 : i32
    %29 = tpu.dynamic_rotate %10 by %c240_i32 dim 1 : vector<8x256xf32>, i32 -> vector<8x256xf32>
    %30 = vector.broadcast %7 : vector<1x256xf32> to vector<8x256xf32>
    %31 = arith.mulf %29, %30 : vector<8x256xf32>
    %c239_i32 = arith.constant 239 : i32
    %32 = tpu.dynamic_rotate %10 by %c239_i32 dim 1 : vector<8x256xf32>, i32 -> vector<8x256xf32>
    %33 = vector.broadcast %8 : vector<1x256xf32> to vector<8x256xf32>
    %34 = arith.mulf %32, %33 : vector<8x256xf32>
    %35 = tpu.concatenate %13, %16, %19, %22, %10, %25, %28, %31, %34 in 0 : vector<8x256xf32>, vector<8x256xf32>, vector<8x256xf32>, vector<8x256xf32>, vector<8x256xf32>, vector<8x256xf32>, vector<8x256xf32>, vector<8x256xf32>, vector<8x256xf32> -> vector<72x256xf32>
    %c0_4 = arith.constant 0 : index
    %c0_5 = arith.constant 0 : index
    %36 = vector.load %arg4[%c0_4, %c0_5] : memref<8x72xf32, #tpu.memory_space<vmem>>, vector<8x72xf32>
    %cst = arith.constant dense<0.000000e+00> : vector<8x256xf32>
    %37 = tpu.matmul %36, %35, %cst {dimension_numbers = #tpu.dot_dimension_numbers<[1], [0], [0], [1], [0, 0, 1, 1], [], []>} : vector<8x72xf32>, vector<72x256xf32>, vector<8x256xf32> -> vector<8x256xf32>
    %c0_6 = arith.constant 0 : index
    %c0_7 = arith.constant 0 : index
    %38 = vector.load %arg5[%c0_6, %c0_7] : memref<8x1xf32, #tpu.memory_space<vmem>>, vector<8x1xf32>
    %39 = vector.broadcast %38 : vector<8x1xf32> to vector<8x256xf32>
    %40 = arith.addf %37, %39 : vector<8x256xf32>
    %cst_8 = arith.constant 0.000000e+00 : f32
    %41 = vector.broadcast %cst_8 : f32 to vector<8x256xf32>
    %42 = arith.maximumf %40, %41 : vector<8x256xf32>
    %c0_9 = arith.constant 0 : index
    %c0_10 = arith.constant 0 : index
    %c0_11 = arith.constant 0 : index
    %43 = vector.load %arg2[%c0_9, %c0_10, %c0_11] : memref<1x8x64xf32, #tpu.memory_space<vmem>>, vector<1x8x64xf32>
    %44 = vector.shape_cast %43 : vector<1x8x64xf32> to vector<8x64xf32>
    %c0_12 = arith.constant 0 : index
    %c0_13 = arith.constant 0 : index
    %45 = vector.load %arg8[%c0_12, %c0_13] : memref<64x256xf32, #tpu.memory_space<vmem>>, vector<64x256xf32>
    %cst_14 = arith.constant dense<0.000000e+00> : vector<8x256xf32>
    %46 = tpu.matmul %44, %45, %cst_14 {dimension_numbers = #tpu.dot_dimension_numbers<[1], [0], [0], [1], [0, 0, 1, 1], [], []>} : vector<8x64xf32>, vector<64x256xf32>, vector<8x256xf32> -> vector<8x256xf32>
    %47 = arith.addf %42, %46 : vector<8x256xf32>
    %c17_i32_15 = arith.constant 17 : i32
    %48 = tpu.dynamic_rotate %47 by %c17_i32_15 dim 1 : vector<8x256xf32>, i32 -> vector<8x256xf32>
    %49 = vector.broadcast %1 : vector<1x256xf32> to vector<8x256xf32>
    %50 = arith.mulf %48, %49 : vector<8x256xf32>
    %c16_i32_16 = arith.constant 16 : i32
    %51 = tpu.dynamic_rotate %47 by %c16_i32_16 dim 1 : vector<8x256xf32>, i32 -> vector<8x256xf32>
    %52 = vector.broadcast %2 : vector<1x256xf32> to vector<8x256xf32>
    %53 = arith.mulf %51, %52 : vector<8x256xf32>
    %c15_i32_17 = arith.constant 15 : i32
    %54 = tpu.dynamic_rotate %47 by %c15_i32_17 dim 1 : vector<8x256xf32>, i32 -> vector<8x256xf32>
    %55 = vector.broadcast %3 : vector<1x256xf32> to vector<8x256xf32>
    %56 = arith.mulf %54, %55 : vector<8x256xf32>
    %c1_i32_18 = arith.constant 1 : i32
    %57 = tpu.dynamic_rotate %47 by %c1_i32_18 dim 1 : vector<8x256xf32>, i32 -> vector<8x256xf32>
    %58 = vector.broadcast %4 : vector<1x256xf32> to vector<8x256xf32>
    %59 = arith.mulf %57, %58 : vector<8x256xf32>
    %c255_i32_19 = arith.constant 255 : i32
    %60 = tpu.dynamic_rotate %47 by %c255_i32_19 dim 1 : vector<8x256xf32>, i32 -> vector<8x256xf32>
    %61 = vector.broadcast %5 : vector<1x256xf32> to vector<8x256xf32>
    %62 = arith.mulf %60, %61 : vector<8x256xf32>
    %c241_i32_20 = arith.constant 241 : i32
    %63 = tpu.dynamic_rotate %47 by %c241_i32_20 dim 1 : vector<8x256xf32>, i32 -> vector<8x256xf32>
    %64 = vector.broadcast %6 : vector<1x256xf32> to vector<8x256xf32>
    %65 = arith.mulf %63, %64 : vector<8x256xf32>
    %c240_i32_21 = arith.constant 240 : i32
    %66 = tpu.dynamic_rotate %47 by %c240_i32_21 dim 1 : vector<8x256xf32>, i32 -> vector<8x256xf32>
    %67 = vector.broadcast %7 : vector<1x256xf32> to vector<8x256xf32>
    %68 = arith.mulf %66, %67 : vector<8x256xf32>
    %c239_i32_22 = arith.constant 239 : i32
    %69 = tpu.dynamic_rotate %47 by %c239_i32_22 dim 1 : vector<8x256xf32>, i32 -> vector<8x256xf32>
    %70 = vector.broadcast %8 : vector<1x256xf32> to vector<8x256xf32>
    %71 = arith.mulf %69, %70 : vector<8x256xf32>
    %72 = tpu.concatenate %50, %53, %56, %59, %47, %62, %65, %68, %71 in 0 : vector<8x256xf32>, vector<8x256xf32>, vector<8x256xf32>, vector<8x256xf32>, vector<8x256xf32>, vector<8x256xf32>, vector<8x256xf32>, vector<8x256xf32>, vector<8x256xf32> -> vector<72x256xf32>
    %c0_23 = arith.constant 0 : index
    %c0_24 = arith.constant 0 : index
    %73 = vector.load %arg6[%c0_23, %c0_24] : memref<8x72xf32, #tpu.memory_space<vmem>>, vector<8x72xf32>
    %cst_25 = arith.constant dense<0.000000e+00> : vector<8x256xf32>
    %74 = tpu.matmul %73, %72, %cst_25 {dimension_numbers = #tpu.dot_dimension_numbers<[1], [0], [0], [1], [0, 0, 1, 1], [], []>} : vector<8x72xf32>, vector<72x256xf32>, vector<8x256xf32> -> vector<8x256xf32>
    %c0_26 = arith.constant 0 : index
    %c0_27 = arith.constant 0 : index
    %75 = vector.load %arg7[%c0_26, %c0_27] : memref<8x1xf32, #tpu.memory_space<vmem>>, vector<8x1xf32>
    %76 = vector.broadcast %75 : vector<8x1xf32> to vector<8x256xf32>
    %77 = arith.addf %74, %76 : vector<8x256xf32>
    %cst_28 = arith.constant 0.000000e+00 : f32
    %78 = vector.broadcast %cst_28 : f32 to vector<8x256xf32>
    %79 = arith.maximumf %77, %78 : vector<8x256xf32>
    %c0_29 = arith.constant 0 : index
    %c0_30 = arith.constant 0 : index
    %c0_31 = arith.constant 0 : index
    %80 = vector.load %arg9[%c0_29, %c0_30, %c0_31] : memref<1x8x256xf32, #tpu.memory_space<vmem>>, vector<1x8x256xf32>
    %81 = vector.shape_cast %80 : vector<1x8x256xf32> to vector<8x256xf32>
    %82 = vector.shape_cast %79 : vector<8x256xf32> to vector<1x8x256xf32>
    tpu.vector_store %arg9[%c0_29, %c0_30, %c0_31], %82 {strides = array<i32>} : memref<1x8x256xf32, #tpu.memory_space<vmem>>, vector<1x8x256xf32>,
    return
  }
  func.func @transform_0(%arg0: i32) -> (i32, i32, i32) {
    %c0_i32 = arith.constant 0 : i32
    %c0_i32_0 = arith.constant 0 : i32
    %c0_i32_1 = arith.constant 0 : i32
    return %arg0, %c0_i32, %c0_i32_0 : i32, i32, i32
  }
  func.func @transform_1(%arg0: i32) -> (i32, i32, i32) {
    %c0_i32 = arith.constant 0 : i32
    %c0_i32_0 = arith.constant 0 : i32
    %c0_i32_1 = arith.constant 0 : i32
    return %arg0, %c0_i32, %c0_i32_0 : i32, i32, i32
  }
  func.func @transform_2(%arg0: i32) -> (i32, i32) {
    %c0_i32 = arith.constant 0 : i32
    %c0_i32_0 = arith.constant 0 : i32
    %c0_i32_1 = arith.constant 0 : i32
    return %c0_i32, %c0_i32_0 : i32, i32
  }
  func.func @transform_3(%arg0: i32) -> (i32, i32) {
    %c0_i32 = arith.constant 0 : i32
    %c0_i32_0 = arith.constant 0 : i32
    %c0_i32_1 = arith.constant 0 : i32
    return %c0_i32, %c0_i32_0 : i32, i32
  }
  func.func @transform_4(%arg0: i32) -> (i32, i32) {
    %c0_i32 = arith.constant 0 : i32
    %c0_i32_0 = arith.constant 0 : i32
    %c0_i32_1 = arith.constant 0 : i32
    return %c0_i32, %c0_i32_0 : i32, i32
  }
  func.func @transform_5(%arg0: i32) -> (i32, i32) {
    %c0_i32 = arith.constant 0 : i32
    %c0_i32_0 = arith.constant 0 : i32
    %c0_i32_1 = arith.constant 0 : i32
    return %c0_i32, %c0_i32_0 : i32, i32
  }
  func.func @transform_6(%arg0: i32) -> (i32, i32) {
    %c0_i32 = arith.constant 0 : i32
    %c0_i32_0 = arith.constant 0 : i32
    %c0_i32_1 = arith.constant 0 : i32
    return %c0_i32, %c0_i32_0 : i32, i32
  }
  func.func @transform_7(%arg0: i32) -> (i32, i32) {
    %c0_i32 = arith.constant 0 : i32
    %c0_i32_0 = arith.constant 0 : i32
    %c0_i32_1 = arith.constant 0 : i32
    return %c0_i32, %c0_i32_0 : i32, i32
  }
  func.func @transform_8(%arg0: i32) -> (i32, i32, i32) {
    %c0_i32 = arith.constant 0 : i32
    %c0_i32_0 = arith.constant 0 : i32
    %c0_i32_1 = arith.constant 0 : i32
    return %arg0, %c0_i32, %c0_i32_0 : i32, i32, i32
  }
}

</mosaic_0001>

<llo_original>
// kernel: uafm_forward.1
$region0: #{uafm_forward.1}
  #allocation0 [shape = 'u32[]', space=smem, size = 0x4, offset = 0x4, fixed_abs, tag = 'smem constant byte address 0x4 - core index']
  #allocation1 [shape = 'u32[72,128]{1,0:T(1,128)}', space=vmem, size = 0x9000, scoped, tag = 'internal scratch']
  %s0 = inlined_call_operand.vmem [shape: f32[2,8,256], index: 0, kind: input, shape index: {}]
  %s1 = inlined_call_operand.vmem [shape: f32[2,8,64], index: 1, kind: input, shape index: {}]
  %s2 = inlined_call_operand.vmem [shape: f32[9,256], index: 2, kind: input, shape index: {}]
  %s3 = inlined_call_operand.vmem [shape: f32[8,72], index: 3, kind: input, shape index: {}]
  %s4 = inlined_call_operand.vmem [shape: f32[8,1], index: 4, kind: input, shape index: {}]
  %s5 = inlined_call_operand.vmem [shape: f32[8,72], index: 5, kind: input, shape index: {}]
  %s6 = inlined_call_operand.vmem [shape: f32[8,1], index: 6, kind: input, shape index: {}]
  %s7 = inlined_call_operand.vmem [shape: f32[64,256], index: 7, kind: input, shape index: {}]
  %s8 = inlined_call_operand.vmem [shape: f32[2,8,256], index: 8, kind: output, shape index: {}]
  %s9 = sld [smem:[#allocation0]]
  $region65: #{uafm_forward.1} parent=0
    _
  %s11 = ssub.s32 1, %s9
  %s12 = scalar_select 0, %s11, %s9
  loop: start=0, step=1, limit=4
  $region2: #{uafm_forward.1} parent=0 // loop_pre_header
    _
  $region3: #{uafm_forward.1} parent=0 // loop_header
    %s14 = sphi 0, %s18
    %p15 = scmp.ge.s32.totalorder %s14, 4
    %s24 = sphi 0, %s26
    %s27 = sphi 0, %s24
    %s28 = sphi 0, %s27
    %s44 = sphi 0, %s28
    %s50 = sphi 0, %s52
    %s53 = sphi 0, %s50
    %s54 = sphi 0, %s53
    %s70 = sphi 0, %s54
    %s74 = sphi 0, %s74
    %s76 = sphi 0, %s74
    %s77 = sphi 0, %s76
    %s91 = sphi 0, %s77
    %s95 = sphi 0, %s95
    %s97 = sphi 0, %s95
    %s98 = sphi 0, %s97
    %s112 = sphi 0, %s98
    %s116 = sphi 0, %s116
    %s118 = sphi 0, %s116
    %s119 = sphi 0, %s118
    %s133 = sphi 0, %s119
    %s137 = sphi 0, %s137
    %s139 = sphi 0, %s137
    %s140 = sphi 0, %s139
    %s154 = sphi 0, %s140
    %s158 = sphi 0, %s158
    %s160 = sphi 0, %s158
    %s161 = sphi 0, %s160
    %s175 = sphi 0, %s161
    %s179 = sphi 0, %s179
    %s181 = sphi 0, %s179
    %s182 = sphi 0, %s181
    %s196 = sphi 0, %s182
    %s202 = sphi 0, %s204
    %s205 = sphi 0, %s202
    %s206 = sphi 0, %s205
    %s222 = sphi 0, %s206
  $region4: #{uafm_forward.1} parent=0 // loop_header_branch
    %17 = sbr.rel (%p15) target = $region8
  $region5: #{uafm_forward.1} parent=0 // loop_body
    %s19 = ssub.s32 %s14, 1
    %s20 = ssub.s32 %s14, 2
    %s21 = sadd.s32 %s14, 1
    %s22 = ssub.s32 %s14, %s21
    %p23 = scmp.eq.s32.totalorder %s22, 0
    %s25 = sadd.s32 %s24, 1
    %s26 = scalar_select %p23, %s24, %s25
    %p29 = pneg %p23
    %p30 = scmp.eq.s32.totalorder %s14, 1
    %p31 = por %p29, %p30
    %p32 = scmp.ne.s32.totalorder %s24, %s27
    %p33 = scmp.eq.s32.totalorder %s14, 0
    %p34 = por %p32, %p33
    %p35 = scmp.ne.s32.totalorder %s24, %s27
    %p36 = scmp.eq.s32.totalorder %s19, 1
    %p37 = por %p35, %p36
    %p38 = scmp.ne.s32.totalorder %s27, %s28
    %p39 = scmp.eq.s32.totalorder %s19, 0
    %p40 = por %p38, %p39
    %p41 = scmp.ne.s32.totalorder %s27, %s28
    %p42 = scmp.eq.s32.totalorder %s20, 1
    %p43 = por %p41, %p42
    %p45 = scmp.ne.s32.totalorder %s28, %s44
    %p46 = scmp.eq.s32.totalorder %s20, 0
    %p47 = por %p45, %p46
    %s48 = ssub.s32 %s14, %s21
    %p49 = scmp.eq.s32.totalorder %s48, 0
    %s51 = sadd.s32 %s50, 1
    %s52 = scalar_select %p49, %s50, %s51
    %p55 = pneg %p49
    %p56 = scmp.eq.s32.totalorder %s14, 1
    %p57 = por %p55, %p56
    %p58 = scmp.ne.s32.totalorder %s50, %s53
    %p59 = scmp.eq.s32.totalorder %s14, 0
    %p60 = por %p58, %p59
    %p61 = scmp.ne.s32.totalorder %s50, %s53
    %p62 = scmp.eq.s32.totalorder %s19, 1
    %p63 = por %p61, %p62
    %p64 = scmp.ne.s32.totalorder %s53, %s54
    %p65 = scmp.eq.s32.totalorder %s19, 0
    %p66 = por %p64, %p65
    %p67 = scmp.ne.s32.totalorder %s53, %s54
    %p68 = scmp.eq.s32.totalorder %s20, 1
    %p69 = por %p67, %p68
    %p71 = scmp.ne.s32.totalorder %s54, %s70
    %p72 = scmp.eq.s32.totalorder %s20, 0
    %p73 = por %p71, %p72
    %s75 = sadd.s32 %s74, 1
    %p78 = scmp.eq.s32.totalorder %s14, 1
    %p79 = scmp.ne.s32.totalorder %s74, %s76
    %p80 = scmp.eq.s32.totalorder %s14, 0
    %p81 = por %p79, %p80
    %p82 = scmp.ne.s32.totalorder %s74, %s76
    %p83 = scmp.eq.s32.totalorder %s19, 1
    %p84 = por %p82, %p83
    %p85 = scmp.ne.s32.totalorder %s76, %s77
    %p86 = scmp.eq.s32.totalorder %s19, 0
    %p87 = por %p85, %p86
    %p88 = scmp.ne.s32.totalorder %s76, %s77
    %p89 = scmp.eq.s32.totalorder %s20, 1
    %p90 = por %p88, %p89
    %p92 = scmp.ne.s32.totalorder %s77, %s91
    %p93 = scmp.eq.s32.totalorder %s20, 0
    %p94 = por %p92, %p93
    %s96 = sadd.s32 %s95, 1
    %p99 = scmp.eq.s32.totalorder %s14, 1
    %p100 = scmp.ne.s32.totalorder %s95, %s97
    %p101 = scmp.eq.s32.totalorder %s14, 0
    %p102 = por %p100, %p101
    %p103 = scmp.ne.s32.totalorder %s95, %s97
    %p104 = scmp.eq.s32.totalorder %s19, 1
    %p105 = por %p103, %p104
    %p106 = scmp.ne.s32.totalorder %s97, %s98
    %p107 = scmp.eq.s32.totalorder %s19, 0
    %p108 = por %p106, %p107
    %p109 = scmp.ne.s32.totalorder %s97, %s98
    %p110 = scmp.eq.s32.totalorder %s20, 1
    %p111 = por %p109, %p110
    %p113 = scmp.ne.s32.totalorder %s98, %s112
    %p114 = scmp.eq.s32.totalorder %s20, 0
    %p115 = por %p113, %p114
    %s117 = sadd.s32 %s116, 1
    %p120 = scmp.eq.s32.totalorder %s14, 1
    %p121 = scmp.ne.s32.totalorder %s116, %s118
    %p122 = scmp.eq.s32.totalorder %s14, 0
    %p123 = por %p121, %p122
    %p124 = scmp.ne.s32.totalorder %s116, %s118
    %p125 = scmp.eq.s32.totalorder %s19, 1
    %p126 = por %p124, %p125
    %p127 = scmp.ne.s32.totalorder %s118, %s119
    %p128 = scmp.eq.s32.totalorder %s19, 0
    %p129 = por %p127, %p128
    %p130 = scmp.ne.s32.totalorder %s118, %s119
    %p131 = scmp.eq.s32.totalorder %s20, 1
    %p132 = por %p130, %p131
    %p134 = scmp.ne.s32.totalorder %s119, %s133
    %p135 = scmp.eq.s32.totalorder %s20, 0
    %p136 = por %p134, %p135
    %s138 = sadd.s32 %s137, 1
    %p141 = scmp.eq.s32.totalorder %s14, 1
    %p142 = scmp.ne.s32.totalorder %s137, %s139
    %p143 = scmp.eq.s32.totalorder %s14, 0
    %p144 = por %p142, %p143
    %p145 = scmp.ne.s32.totalorder %s137, %s139
    %p146 = scmp.eq.s32.totalorder %s19, 1
    %p147 = por %p145, %p146
    %p148 = scmp.ne.s32.totalorder %s139, %s140
    %p149 = scmp.eq.s32.totalorder %s19, 0
    %p150 = por %p148, %p149
    %p151 = scmp.ne.s32.totalorder %s139, %s140
    %p152 = scmp.eq.s32.totalorder %s20, 1
    %p153 = por %p151, %p152
    %p155 = scmp.ne.s32.totalorder %s140, %s154
    %p156 = scmp.eq.s32.totalorder %s20, 0
    %p157 = por %p155, %p156
    %s159 = sadd.s32 %s158, 1
    %p162 = scmp.eq.s32.totalorder %s14, 1
    %p163 = scmp.ne.s32.totalorder %s158, %s160
    %p164 = scmp.eq.s32.totalorder %s14, 0
    %p165 = por %p163, %p164
    %p166 = scmp.ne.s32.totalorder %s158, %s160
    %p167 = scmp.eq.s32.totalorder %s19, 1
    %p168 = por %p166, %p167
    %p169 = scmp.ne.s32.totalorder %s160, %s161
    %p170 = scmp.eq.s32.totalorder %s19, 0
    %p171 = por %p169, %p170
    %p172 = scmp.ne.s32.totalorder %s160, %s161
    %p173 = scmp.eq.s32.totalorder %s20, 1
    %p174 = por %p172, %p173
    %p176 = scmp.ne.s32.totalorder %s161, %s175
    %p177 = scmp.eq.s32.totalorder %s20, 0
    %p178 = por %p176, %p177
    %s180 = sadd.s32 %s179, 1
    %p183 = scmp.eq.s32.totalorder %s14, 1
    %p184 = scmp.ne.s32.totalorder %s179, %s181
    %p185 = scmp.eq.s32.totalorder %s14, 0
    %p186 = por %p184, %p185
    %p187 = scmp.ne.s32.totalorder %s179, %s181
    %p188 = scmp.eq.s32.totalorder %s19, 1
    %p189 = por %p187, %p188
    %p190 = scmp.ne.s32.totalorder %s181, %s182
    %p191 = scmp.eq.s32.totalorder %s19, 0
    %p192 = por %p190, %p191
    %p193 = scmp.ne.s32.totalorder %s181, %s182
    %p194 = scmp.eq.s32.totalorder %s20, 1
    %p195 = por %p193, %p194
    %p197 = scmp.ne.s32.totalorder %s182, %s196
    %p198 = scmp.eq.s32.totalorder %s20, 0
    %p199 = por %p197, %p198
    %s200 = ssub.s32 %s14, %s21
    %p201 = scmp.eq.s32.totalorder %s200, 0
    %s203 = sadd.s32 %s202, 1
    %s204 = scalar_select %p201, %s202, %s203
    %p207 = pneg %p201
    %p208 = scmp.eq.s32.totalorder %s14, 1
    %p209 = por %p207, %p208
    %p210 = scmp.ne.s32.totalorder %s202, %s205
    %p211 = scmp.eq.s32.totalorder %s14, 0
    %p212 = por %p210, %p211
    %p213 = scmp.ne.s32.totalorder %s202, %s205
    %p214 = scmp.eq.s32.totalorder %s19, 1
    %p215 = por %p213, %p214
    %p216 = scmp.ne.s32.totalorder %s205, %s206
    %p217 = scmp.eq.s32.totalorder %s19, 0
    %p218 = por %p216, %p217
    %p219 = scmp.ne.s32.totalorder %s205, %s206
    %p220 = scmp.eq.s32.totalorder %s20, 1
    %p221 = por %p219, %p220
    %p223 = scmp.ne.s32.totalorder %s206, %s222
    %p224 = scmp.eq.s32.totalorder %s20, 0
    %p225 = por %p223, %p224
    %p226 = scmp.le.s32.totalorder 1, %s14
    %p227 = scmp.lt.s32.totalorder %s14, 3
    %p228 = pnand %p226, %p227
    %p229 = pneg %p228
    // Predicated region
    $region9: #{uafm_forward.1} parent=5 // pred_check
      _
    $region10: #{uafm_forward.1} parent=5 // pred_check_branch
      %231 = sbr.rel (%p228) target = $region12
    $region11: #{uafm_forward.1} parent=5 // pred_region
      %s232 = ssub.s32 %s14, 1
      // Predicated region
      $region13: #{uafm_forward.1} parent=11 // pred_check
        %p233 = pneg %p87
      $region14: #{uafm_forward.1} parent=11 // pred_check_branch
        %235 = sbr.rel (%p233) target = $region16
      $region15: #{uafm_forward.1} parent=11 // pred_region
        _
      $region16: #{uafm_forward.1} parent=11 // pred_fallthru
        _
      // Predicated region
      $region17: #{uafm_forward.1} parent=11 // pred_check
        %p236 = pneg %p108
      $region18: #{uafm_forward.1} parent=11 // pred_check_branch
        %238 = sbr.rel (%p236) target = $region20
      $region19: #{uafm_forward.1} parent=11 // pred_region
        _
      $region20: #{uafm_forward.1} parent=11 // pred_fallthru
        _
      // Predicated region
      $region21: #{uafm_forward.1} parent=11 // pred_check
        %p239 = pneg %p129
      $region22: #{uafm_forward.1} parent=11 // pred_check_branch
        %241 = sbr.rel (%p239) target = $region24
      $region23: #{uafm_forward.1} parent=11 // pred_region
        _
      $region24: #{uafm_forward.1} parent=11 // pred_fallthru
        _
      // Predicated region
      $region25: #{uafm_forward.1} parent=11 // pred_check
        %p242 = pneg %p150
      $region26: #{uafm_forward.1} parent=11 // pred_check_branch
        %244 = sbr.rel (%p242) target = $region28
      $region27: #{uafm_forward.1} parent=11 // pred_region
        _
      $region28: #{uafm_forward.1} parent=11 // pred_fallthru
        _
      // Predicated region
      $region29: #{uafm_forward.1} parent=11 // pred_check
        %p245 = pneg %p171
      $region30: #{uafm_forward.1} parent=11 // pred_check_branch
        %247 = sbr.rel (%p245) target = $region32
      $region31: #{uafm_forward.1} parent=11 // pred_region
        _
      $region32: #{uafm_forward.1} parent=11 // pred_fallthru
        _
      // Predicated region
      $region33: #{uafm_forward.1} parent=11 // pred_check
        %p248 = pneg %p192
      $region34: #{uafm_forward.1} parent=11 // pred_check_branch
        %250 = sbr.rel (%p248) target = $region36
      $region35: #{uafm_forward.1} parent=11 // pred_region
        _
      $region36: #{uafm_forward.1} parent=11 // pred_fallthru
        _
    $region12: #{uafm_forward.1} parent=5 // pred_fallthru
      _
    %p251 = scmp.lt.s32.totalorder %s14, 2
    // Predicated region
    $region37: #{uafm_forward.1} parent=5 // pred_check
      %p252 = pneg %p251
    $region38: #{uafm_forward.1} parent=5 // pred_check_branch
      %254 = sbr.rel (%p252) target = $region40
    $region39: #{uafm_forward.1} parent=5 // pred_region
      // Predicated region
      $region41: #{uafm_forward.1} parent=39 // pred_check
        %p255 = pneg %p34
      $region42: #{uafm_forward.1} parent=39 // pred_check_branch
        %257 = sbr.rel (%p255) target = $region44
      $region43: #{uafm_forward.1} parent=39 // pred_region
        %p258 = scmp.lt.s32.totalorder %s14, 1
        %s259 = scalar_select %p258, %s14, 1
        %s260 = smul.addr %s259, 2
        %s261 = smul.addr %s260, 8
        %s262 = scalar_lea.vmem %s0, %s261
      $region44: #{uafm_forward.1} parent=39 // pred_fallthru
        _
      // Predicated region
      $region45: #{uafm_forward.1} parent=39 // pred_check
        %p263 = pneg %p60
      $region46: #{uafm_forward.1} parent=39 // pred_check_branch
        %265 = sbr.rel (%p263) target = $region48
      $region47: #{uafm_forward.1} parent=39 // pred_region
        %p266 = scmp.lt.s32.totalorder %s14, 1
        %s267 = scalar_select %p266, %s14, 1
        %s268 = smul.addr %s267, 8
        %s269 = scalar_lea.vmem %s1, %s268
      $region48: #{uafm_forward.1} parent=39 // pred_fallthru
        _
    $region40: #{uafm_forward.1} parent=5 // pred_fallthru
      _
    %p270 = scmp.le.s32.totalorder 1, %s14
    %p271 = scmp.lt.s32.totalorder %s14, 3
    %p272 = pnand %p270, %p271
    %p273 = pneg %p272
    // Predicated region
    $region49: #{uafm_forward.1} parent=5 // pred_check
      _
    $region50: #{uafm_forward.1} parent=5 // pred_check_branch
      %275 = sbr.rel (%p272) target = $region52
    $region51: #{uafm_forward.1} parent=5 // pred_region
      %s276 = ssub.s32 %s14, 1
      %p277 = scmp.lt.s32.totalorder %s19, 1
      %s278 = scalar_select %p277, %s19, 1
      %s279 = smul.addr %s278, 2
      %s280 = smul.addr %s279, 8
      %s281 = scalar_lea.vmem %s0, %s280
      %p282 = pneg %p40
      %p283 = pneg %p37
      %p284 = scmp.lt.s32.totalorder %s19, 1
      %s285 = scalar_select %p284, %s19, 1
      %s286 = smul.addr %s285, 8
      %s287 = scalar_lea.vmem %s1, %s286
      %p288 = pneg %p66
      %p289 = pneg %p63
      %p290 = pneg %p87
      %p291 = pneg %p84
      %p292 = pneg %p108
      %p293 = pneg %p105
      %p294 = pneg %p129
      %p295 = pneg %p126
      %p296 = pneg %p150
      %p297 = pneg %p147
      %p298 = pneg %p171
      %p299 = pneg %p168
      %p300 = pneg %p192
      %p301 = pneg %p189
      %p302 = pneg %p218
      %p303 = pneg %p215
      %p304 = scmp.lt.s32.totalorder %s19, 1
      %s305 = scalar_select %p304, %s19, 1
      %s306 = smul.addr %s305, 2
      %s307 = smul.addr %s306, 8
      %s308 = scalar_lea.vmem %s8, %s307
      %p309 = scmp.lt.s32.totalorder %s19, 1
      %s310 = scalar_select %p309, %s19, 1
      %s311 = smul.addr %s310, 2
      %s312 = smul.addr %s311, 8
      %s313 = scalar_lea.vmem %s0, %s312
      %p314 = scmp.lt.s32.totalorder %s19, 1
      %s315 = scalar_select %p314, %s19, 1
      %s316 = smul.addr %s315, 8
      %s317 = scalar_lea.vmem %s1, %s316
      %p318 = scmp.lt.s32.totalorder %s19, 1
      %s319 = scalar_select %p318, %s19, 1
      %s320 = smul.addr %s319, 2
      %s321 = smul.addr %s320, 8
      %s322 = scalar_lea.vmem %s8, %s321
      %v323 = vld [vmem:[%s2] sm:$0xff]
      %v324 = vld [vmem:[%s2 + $0x8] sm:$0xff]
      %v325 = vld [vmem:[%s2 + $0x10] sm:$0x1]
      %v326 = vld [vmem:[%s2 + $0x18] sm:$0x1]
      %v327 = vld [vmem:[%s313] sm:$0xff]
      %v328 = vld [vmem:[%s313 + $0x8] sm:$0xff]
      %329 = vrot.lane.b32.xlu0 %v327, 17
      %v330 = vpop.permute.xlu0 %329
      %331 = vrot.lane.b32.xlu0 %v328, 17
      %v332 = vpop.permute.xlu0 %331
      %v333 = vlaneseq
      %v334 = vand.u32 %v333, 127
      %vm335 = vcmp.lt.s32.totalorder %v334, 17
      %v336 = vsel %vm335, %v330, %v332
      %v337 = vsel %vm335, %v332, %v330
      %v338 = vperm.slane %v323, 0
      %v339 = vperm.slane %v324, 0
      %v340 = vmul.f32 %v337, %v338
      %v341 = vmul.f32 %v336, %v339
      %342 = vrot.lane.b32.xlu0 %v327, 16
      %v343 = vpop.permute.xlu0 %342
      %344 = vrot.lane.b32.xlu0 %v328, 16
      %v345 = vpop.permute.xlu0 %344
      %vm346 = vcmp.lt.s32.totalorder %v334, 16
      %v347 = vsel %vm346, %v343, %v345
      %v348 = vsel %vm346, %v345, %v343
      %v349 = vperm.slane %v323, 1
      %v350 = vperm.slane %v324, 1
      %v351 = vmul.f32 %v348, %v349
      %v352 = vmul.f32 %v347, %v350
      %353 = vrot.lane.b32.xlu0 %v327, 15
      %v354 = vpop.permute.xlu0 %353
      %355 = vrot.lane.b32.xlu0 %v328, 15
      %v356 = vpop.permute.xlu0 %355
      %vm357 = vcmp.lt.s32.totalorder %v334, 15
      %v358 = vsel %vm357, %v354, %v356
      %v359 = vsel %vm357, %v356, %v354
      %v360 = vperm.slane %v323, 2
      %v361 = vperm.slane %v324, 2
      %v362 = vmul.f32 %v359, %v360
      %v363 = vmul.f32 %v358, %v361
      %364 = vrot.lane.b32.xlu0 %v327, 1
      %v365 = vpop.permute.xlu0 %364
      %366 = vrot.lane.b32.xlu0 %v328, 1
      %v367 = vpop.permute.xlu0 %366
      %vm368 = vcmp.lt.s32.totalorder %v334, 1
      %v369 = vsel %vm368, %v365, %v367
      %v370 = vsel %vm368, %v367, %v365
      %v371 = vperm.slane %v323, 3
      %v372 = vperm.slane %v324, 3
      %v373 = vmul.f32 %v370, %v371
      %v374 = vmul.f32 %v369, %v372
      %375 = vrot.lane.b32.xlu0 %v327, 127
      %v376 = vpop.permute.xlu0 %375
      %377 = vrot.lane.b32.xlu0 %v328, 127
      %v378 = vpop.permute.xlu0 %377
      %vm379 = vcmp.lt.s32.totalorder %v334, 127
      %v380 = vsel %vm379, %v376, %v378
      %v381 = vsel %vm379, %v378, %v376
      %v382 = vperm.slane %v323, 5
      %v383 = vperm.slane %v324, 5
      %v384 = vmul.f32 %v380, %v382
      %v385 = vmul.f32 %v381, %v383
      %386 = vrot.lane.b32.xlu0 %v327, 113
      %v387 = vpop.permute.xlu0 %386
      %388 = vrot.lane.b32.xlu0 %v328, 113
      %v389 = vpop.permute.xlu0 %388
      %vm390 = vcmp.lt.s32.totalorder %v334, 113
      %v391 = vsel %vm390, %v387, %v389
      %v392 = vsel %vm390, %v389, %v387
      %v393 = vperm.slane %v323, 6
      %v394 = vperm.slane %v324, 6
      %v395 = vmul.f32 %v391, %v393
      %v396 = vmul.f32 %v392, %v394
      %397 = vrot.lane.b32.xlu0 %v327, 112
      %v398 = vpop.permute.xlu0 %397
      %399 = vrot.lane.b32.xlu0 %v328, 112
      %v400 = vpop.permute.xlu0 %399
      %vm401 = vcmp.lt.s32.totalorder %v334, 112
      %v402 = vsel %vm401, %v398, %v400
      %v403 = vsel %vm401, %v400, %v398
      %v404 = vperm.slane %v323, 7
      %v405 = vperm.slane %v324, 7
      %v406 = vmul.f32 %v402, %v404
      %v407 = vmul.f32 %v403, %v405
      %408 = vrot.lane.b32.xlu0 %v327, 111
      %v409 = vpop.permute.xlu0 %408
      %410 = vrot.lane.b32.xlu0 %v328, 111
      %v411 = vpop.permute.xlu0 %410
      %vm412 = vcmp.lt.s32.totalorder %v334, 111
      %v413 = vsel %vm412, %v409, %v411
      %v414 = vsel %vm412, %v411, %v409
      %v415 = vperm.slane %v325, 0
      %v416 = vperm.slane %v326, 0
      %v417 = vmul.f32 %v413, %v415
      %v418 = vmul.f32 %v414, %v416
      %v419 = vld [vmem:[%s3] sm:$0xff]
      %v420 = vld [vmem:[%s4] sm:$0xff]
      %422 = vset.pattern.permute.xlu0 0
      %423 = vperm.xlu0 %422, %v420
      %v424 = vpop.permute.xlu0 %423
      %vm426 = vcmask 588800
      %v428 = vsel %vm426, %v419, 0
      %430 = vmatpush.msra.mxu0 0.0
      %431 = vmatpush.msra.mxu0 0.0
      %432 = vmatpush.msra.mxu0 0.0
      %433 = vmatpush.msra.mxu0 0.0
      %434 = vmatpush.msra.mxu0 0.0
      %435 = vmatpush.msra.mxu0 0.0
      %436 = vmatpush.msra.mxu0 0.0
      %437 = vmatpush.msra.mxu0 %v417
      %438 = vmatpush.msra.mxu0 %v406
      %439 = vmatpush.msra.mxu0 %v395
      %440 = vmatpush.msra.mxu0 %v384
      %441 = vmatpush.msra.mxu0 %v327
      %442 = vmatpush.msra.mxu0 %v373
      %443 = vmatpush.msra.mxu0 %v362
      %444 = vmatpush.msra.mxu0 %v351
      %445 = vmatpush.msra.mxu0 %v340
      %446 = vmatmul.f32.gmra.mxu0 %v428
      %v447 = vpop.f32.mrf.mxu0
      %v448 = vadd.f32 %v424, %v447
      %449 = vdwg.mxu0
      %450 = vmatpush.msra.mxu0 0.0
      %451 = vmatpush.msra.mxu0 0.0
      %452 = vmatpush.msra.mxu0 0.0
      %453 = vmatpush.msra.mxu0 0.0
      %454 = vmatpush.msra.mxu0 0.0
      %455 = vmatpush.msra.mxu0 0.0
      %456 = vmatpush.msra.mxu0 0.0
      %457 = vmatpush.msra.mxu0 %v418
      %458 = vmatpush.msra.mxu0 %v407
      %459 = vmatpush.msra.mxu0 %v396
      %460 = vmatpush.msra.mxu0 %v385
      %461 = vmatpush.msra.mxu0 %v328
      %462 = vmatpush.msra.mxu0 %v374
      %463 = vmatpush.msra.mxu0 %v363
      %464 = vmatpush.msra.mxu0 %v352
      %465 = vmatpush.msra.mxu0 %v341
      %466 = vmatmul.f32.gmra.mxu0 %v428
      %v467 = vpop.f32.mrf.mxu0
      %v468 = vadd.f32 %v424, %v467
      %469 = vdwg.mxu0
      %v470 = vmax.f32 %v448, 0.0
      %v471 = vmax.f32 %v468, 0.0
      %v472 = vld [vmem:[%s317] sm:$0xff]
      %v473 = vld [vmem:[%s7] sm:$0xff]
      %v474 = vld [vmem:[%s7 + $0x8] sm:$0xff]
      %v475 = vld [vmem:[%s7 + $0x10] sm:$0xff]
      %v476 = vld [vmem:[%s7 + $0x18] sm:$0xff]
      %v477 = vld [vmem:[%s7 + $0x20] sm:$0xff]
      %v478 = vld [vmem:[%s7 + $0x28] sm:$0xff]
      %v479 = vld [vmem:[%s7 + $0x30] sm:$0xff]
      %v480 = vld [vmem:[%s7 + $0x38] sm:$0xff]
      %v481 = vld [vmem:[%s7 + $0x40] sm:$0xff]
      %v482 = vld [vmem:[%s7 + $0x48] sm:$0xff]
      %v483 = vld [vmem:[%s7 + $0x50] sm:$0xff]
      %v484 = vld [vmem:[%s7 + $0x58] sm:$0xff]
      %v485 = vld [vmem:[%s7 + $0x60] sm:$0xff]
      %v486 = vld [vmem:[%s7 + $0x68] sm:$0xff]
      %v487 = vld [vmem:[%s7 + $0x70] sm:$0xff]
      %v488 = vld [vmem:[%s7 + $0x78] sm:$0xff]
      %vm489 = vcmask 523264
      %v491 = vsel %vm489, %v472, 0
      %493 = vmatpush.msra.mxu0 0.0
      %494 = vmatpush.msra.mxu0 0.0
      %495 = vmatpush.msra.mxu0 0.0
      %496 = vmatpush.msra.mxu0 0.0
      %497 = vmatpush.msra.mxu0 0.0
      %498 = vmatpush.msra.mxu0 0.0
      %499 = vmatpush.msra.mxu0 0.0
      %500 = vmatpush.msra.mxu0 0.0
      %501 = vmatpush.msra.mxu0 %v487
      %502 = vmatpush.msra.mxu0 %v485
      %503 = vmatpush.msra.mxu0 %v483
      %504 = vmatpush.msra.mxu0 %v481
      %505 = vmatpush.msra.mxu0 %v479
      %506 = vmatpush.msra.mxu0 %v477
      %507 = vmatpush.msra.mxu0 %v475
      %508 = vmatpush.msra.mxu0 %v473
      %509 = vmatmul.f32.gmra.mxu0 %v491
      %v510 = vpop.f32.mrf.mxu0
      %v511 = vadd.f32 0.0, %v510
      %512 = vdwg.mxu0
      %513 = vmatpush.msra.mxu0 0.0
      %514 = vmatpush.msra.mxu0 0.0
      %515 = vmatpush.msra.mxu0 0.0
      %516 = vmatpush.msra.mxu0 0.0
      %517 = vmatpush.msra.mxu0 0.0
      %518 = vmatpush.msra.mxu0 0.0
      %519 = vmatpush.msra.mxu0 0.0
      %520 = vmatpush.msra.mxu0 0.0
      %521 = vmatpush.msra.mxu0 %v488
      %522 = vmatpush.msra.mxu0 %v486
      %523 = vmatpush.msra.mxu0 %v484
      %524 = vmatpush.msra.mxu0 %v482
      %525 = vmatpush.msra.mxu0 %v480
      %526 = vmatpush.msra.mxu0 %v478
      %527 = vmatpush.msra.mxu0 %v476
      %528 = vmatpush.msra.mxu0 %v474
      %529 = vmatmul.f32.gmra.mxu0 %v491
      %v530 = vpop.f32.mrf.mxu0
      %v531 = vadd.f32 0.0, %v530
      %532 = vdwg.mxu0
      %v533 = vadd.f32 %v470, %v511
      %v534 = vadd.f32 %v471, %v531
      %535 = vrot.lane.b32.xlu0 %v533, 17
      %v536 = vpop.permute.xlu0 %535
      %537 = vrot.lane.b32.xlu0 %v534, 17
      %v538 = vpop.permute.xlu0 %537
      %v539 = vsel %vm335, %v536, %v538
      %v540 = vsel %vm335, %v538, %v536
      %v541 = vmul.f32 %v540, %v338
      %v542 = vmul.f32 %v539, %v339
      %543 = vrot.lane.b32.xlu0 %v533, 16
      %v544 = vpop.permute.xlu0 %543
      %545 = vrot.lane.b32.xlu0 %v534, 16
      %v546 = vpop.permute.xlu0 %545
      %v547 = vsel %vm346, %v544, %v546
      %v548 = vsel %vm346, %v546, %v544
      %v549 = vmul.f32 %v548, %v349
      %v550 = vmul.f32 %v547, %v350
      %551 = vrot.lane.b32.xlu0 %v533, 15
      %v552 = vpop.permute.xlu0 %551
      %553 = vrot.lane.b32.xlu0 %v534, 15
      %v554 = vpop.permute.xlu0 %553
      %v555 = vsel %vm357, %v552, %v554
      %v556 = vsel %vm357, %v554, %v552
      %v557 = vmul.f32 %v556, %v360
      %v558 = vmul.f32 %v555, %v361
      %559 = vrot.lane.b32.xlu0 %v533, 1
      %v560 = vpop.permute.xlu0 %559
      %561 = vrot.lane.b32.xlu0 %v534, 1
      %v562 = vpop.permute.xlu0 %561
      %v563 = vsel %vm368, %v560, %v562
      %v564 = vsel %vm368, %v562, %v560
      %v565 = vmul.f32 %v564, %v371
      %v566 = vmul.f32 %v563, %v372
      %567 = vrot.lane.b32.xlu0 %v533, 127
      %v568 = vpop.permute.xlu0 %567
      %569 = vrot.lane.b32.xlu0 %v534, 127
      %v570 = vpop.permute.xlu0 %569
      %v571 = vsel %vm379, %v568, %v570
      %v572 = vsel %vm379, %v570, %v568
      %v573 = vmul.f32 %v571, %v382
      %v574 = vmul.f32 %v572, %v383
      %575 = vrot.lane.b32.xlu0 %v533, 113
      %v576 = vpop.permute.xlu0 %575
      %577 = vrot.lane.b32.xlu0 %v534, 113
      %v578 = vpop.permute.xlu0 %577
      %v579 = vsel %vm390, %v576, %v578
      %v580 = vsel %vm390, %v578, %v576
      %v581 = vmul.f32 %v579, %v393
      %v582 = vmul.f32 %v580, %v394
      %583 = vrot.lane.b32.xlu0 %v533, 112
      %v584 = vpop.permute.xlu0 %583
      %585 = vrot.lane.b32.xlu0 %v534, 112
      %v586 = vpop.permute.xlu0 %585
      %v587 = vsel %vm401, %v584, %v586
      %v588 = vsel %vm401, %v586, %v584
      %v589 = vmul.f32 %v587, %v404
      %v590 = vmul.f32 %v588, %v405
      %591 = vrot.lane.b32.xlu0 %v533, 111
      %v592 = vpop.permute.xlu0 %591
      %593 = vrot.lane.b32.xlu0 %v534, 111
      %v594 = vpop.permute.xlu0 %593
      %v595 = vsel %vm412, %v592, %v594
      %v596 = vsel %vm412, %v594, %v592
      %v597 = vmul.f32 %v595, %v415
      %v598 = vmul.f32 %v596, %v416
      %v599 = vld [vmem:[%s5] sm:$0xff]
      %v600 = vld [vmem:[%s6] sm:$0xff]
      %602 = vset.pattern.permute.xlu0 0
      %603 = vperm.xlu0 %602, %v600
      %v604 = vpop.permute.xlu0 %603
      %v607 = vsel %vm426, %v599, 0
      %609 = vmatpush.msra.mxu0 0.0
      %610 = vmatpush.msra.mxu0 0.0
      %611 = vmatpush.msra.mxu0 0.0
      %612 = vmatpush.msra.mxu0 0.0
      %613 = vmatpush.msra.mxu0 0.0
      %614 = vmatpush.msra.mxu0 0.0
      %615 = vmatpush.msra.mxu0 0.0
      %616 = vmatpush.msra.mxu0 %v597
      %617 = vmatpush.msra.mxu0 %v589
      %618 = vmatpush.msra.mxu0 %v581
      %619 = vmatpush.msra.mxu0 %v573
      %620 = vmatpush.msra.mxu0 %v533
      %621 = vmatpush.msra.mxu0 %v565
      %622 = vmatpush.msra.mxu0 %v557
      %623 = vmatpush.msra.mxu0 %v549
      %624 = vmatpush.msra.mxu0 %v541
      %625 = vmatmul.f32.gmra.mxu0 %v607
      %v626 = vpop.f32.mrf.mxu0
      %v627 = vadd.f32 %v604, %v626
      %628 = vdwg.mxu0
      %629 = vmatpush.msra.mxu0 0.0
      %630 = vmatpush.msra.mxu0 0.0
      %631 = vmatpush.msra.mxu0 0.0
      %632 = vmatpush.msra.mxu0 0.0
      %633 = vmatpush.msra.mxu0 0.0
      %634 = vmatpush.msra.mxu0 0.0
      %635 = vmatpush.msra.mxu0 0.0
      %636 = vmatpush.msra.mxu0 %v598
      %637 = vmatpush.msra.mxu0 %v590
      %638 = vmatpush.msra.mxu0 %v582
      %639 = vmatpush.msra.mxu0 %v574
      %640 = vmatpush.msra.mxu0 %v534
      %641 = vmatpush.msra.mxu0 %v566
      %642 = vmatpush.msra.mxu0 %v558
      %643 = vmatpush.msra.mxu0 %v550
      %644 = vmatpush.msra.mxu0 %v542
      %645 = vmatmul.f32.gmra.mxu0 %v607
      %v646 = vpop.f32.mrf.mxu0
      %v647 = vadd.f32 %v604, %v646
      %648 = vdwg.mxu0
      %v649 = vmax.f32 %v627, 0.0
      %v650 = vmax.f32 %v647, 0.0
      %651 = vst [vmem:[%s322] sm:$0xff] %v649
      %652 = vst [vmem:[%s322 + $0x8] sm:$0xff] %v650
      %p653 = scmp.lt.s32.totalorder %s19, 1
      %s654 = scalar_select %p653, %s19, 1
      %s655 = smul.addr %s654, 2
      %s656 = smul.addr %s655, 8
      %s657 = scalar_lea.vmem %s8, %s656
      // Predicated region
      $region53: #{uafm_forward.1} parent=51 // pred_check
        %p658 = pneg %p215
      $region54: #{uafm_forward.1} parent=51 // pred_check_branch
        %660 = sbr.rel (%p658) target = $region56
      $region55: #{uafm_forward.1} parent=51 // pred_region
        _
      $region56: #{uafm_forward.1} parent=51 // pred_fallthru
        _
    $region52: #{uafm_forward.1} parent=5 // pred_fallthru
      _
    %p661 = scmp.le.s32.totalorder 2, %s14
    // Predicated region
    $region57: #{uafm_forward.1} parent=5 // pred_check
      %p662 = pneg %p661
    $region58: #{uafm_forward.1} parent=5 // pred_check_branch
      %664 = sbr.rel (%p662) target = $region60
    $region59: #{uafm_forward.1} parent=5 // pred_region
      %s665 = ssub.s32 %s14, 2
      // Predicated region
      $region61: #{uafm_forward.1} parent=59 // pred_check
        %p666 = pneg %p221
      $region62: #{uafm_forward.1} parent=59 // pred_check_branch
        %668 = sbr.rel (%p666) target = $region64
      $region63: #{uafm_forward.1} parent=59 // pred_region
        %p669 = scmp.lt.s32.totalorder %s20, 1
        %s670 = scalar_select %p669, %s20, 1
        %s671 = smul.addr %s670, 2
        %s672 = smul.addr %s671, 8
        %s673 = scalar_lea.vmem %s8, %s672
      $region64: #{uafm_forward.1} parent=59 // pred_fallthru
        _
    $region60: #{uafm_forward.1} parent=5 // pred_fallthru
      _
  $region6: #{uafm_forward.1} parent=0 // loop_footer
    %s18 = sadd.s32 1, %s14
  $region7: #{uafm_forward.1} parent=0 // loop_footer_branch
    %13 = sbr.rel target = $region3
  $region8: #{uafm_forward.1} parent=0 // loop_exit
    _

</llo_original>
